<compile_context>
chip_gen: v7x
topology: tpu7x:2x2x1
jax: 0.10.0
libtpu: 0.0.40
codegen_flags: <defaults>
</compile_context>

<pallas_src>
import functools

import jax
import jax.numpy as jnp
from jax.experimental import pallas as pl
from jax.experimental.pallas import tpu as pltpu

_LANE_CANDIDATES = (4096, 2048, 1024, 512, 256, 128)
_RAGGED_LANE = 512                   # lane used when no candidate divides n exactly
_FAST_PATH_BYTES = 2 * 1024 * 1024   # below this, plain XLA fusion is already at roofline


def _add_then_unary_kernel(x_ref, o_ref, *, op):
    # xx = x + x (the "another op" source), then the unary operator, fused.
    x = x_ref[...]
    o_ref[...] = op(x + x).astype(o_ref.dtype)


def _target_block_bytes():
    """Returns (per-array block bytes, vmem_limit_bytes or None) per TPU generation."""
    kind = ""
    try:
        kind = jax.devices()[0].device_kind.lower()
    except Exception:
        pass
    if "v7" in kind:
        # 8 MiB blocks x 4 buffers (in+out, double-buffered) = 32 MiB, which is
        # exactly the default scoped-VMEM limit on v7x -> raise it (64 MiB phys).
        return 8 * 1024 * 1024, 48 << 20
    if "v6" in kind:
        # 4 MiB x 4 = 16 MiB fits v6e's 32 MiB default scoped VMEM, no flags.
        return 4 * 1024 * 1024, None
    # v5e (16 MiB default scoped VMEM) and unknown chips: stay at 2 MiB blocks,
    # already at the measured bandwidth plateau there.
    return 2 * 1024 * 1024, None


def _sublane(itemsize):
    # dtype-aware sublane tile: (8,128) f32, (16,128) bf16, (32,128) int8/fp8
    return {4: 8, 2: 16, 1: 32}.get(itemsize, 8)


def _run_pallas_2d(x2d, op, out_dtype, target_bytes, vmem_limit, alias_input):
    """Streams a (rows, lane) slab through the fused add+unary kernel."""
    rows, lane = x2d.shape
    in_item = jnp.dtype(x2d.dtype).itemsize
    out_item = jnp.dtype(out_dtype).itemsize
    itb = max(in_item, out_item)
    sub = _sublane(itb)

    if lane * itb * sub <= target_bytes:
        # Common case: full lane width per block, pick rows to hit target bytes.
        tile_lane = lane
        tile_rows = max(sub, (target_bytes // (lane * itb)) // sub * sub)
        if tile_rows >= rows:
            tile_rows = rows                      # full extent is always legal
    else:
        # Very wide lane (e.g. 1-D inputs): also tile the lane dim (mult of 128).
        tile_lane = max(128, (target_bytes // (sub * itb)) // 128 * 128)
        if tile_lane >= lane:
            tile_lane = lane
        tile_rows = rows if rows <= sub else sub

    grid = (pl.cdiv(rows, tile_rows), pl.cdiv(lane, tile_lane))

    extra = {}
    if alias_input and out_dtype == x2d.dtype:
        # Lets XLA reuse the input HBM buffer for the output (lower peak HBM).
        # Off by default: if the operand buffer is a live, non-donated parameter
        # XLA inserts a full copy to honor the alias, costing an extra HBM pass.
        extra["input_output_aliases"] = {0: 0}

    # Both grid axes are independent streaming axes -> "parallel"; on v7x Mosaic
    # shards parallel grid axes across the two TensorCores.
    return pl.pallas_call(
        functools.partial(_add_then_unary_kernel, op=op),
        out_shape=jax.ShapeDtypeStruct((rows, lane), out_dtype),
        grid=grid,
        in_specs=[pl.BlockSpec((tile_rows, tile_lane), lambda i, j: (i, j))],
        out_specs=pl.BlockSpec((tile_rows, tile_lane), lambda i, j: (i, j)),
        compiler_params=pltpu.CompilerParams(
            dimension_semantics=("parallel", "parallel"),
            vmem_limit_bytes=vmem_limit,
        ),
        cost_estimate=pl.CostEstimate(
            flops=2 * rows * lane,                       # add + unary per element
            transcendentals=0,
            bytes_accessed=rows * lane * (in_item + out_item),
        ),
        **extra,
    )(x2d)


def model_from_another_op(x, operator=jax.nn.relu, force_pallas=False,
                          alias_input=False, **kwargs):
    """Pallas equivalent of ModelFromAnotherOp.forward: operator(x + x, **kwargs).

    `operator` must be a strictly element-wise unary jnp / jax.nn function.
    """
    op = functools.partial(operator, **kwargs) if kwargs else operator

    orig_shape = x.shape
    in_dtype = x.dtype
    n = x.size
    itemsize = jnp.dtype(in_dtype).itemsize

    def _jnp_fallback(v):
        return op(jnp.add(v, v))

    if x.ndim == 0 or n == 0:
        return _jnp_fallback(x)

    # Output dtype of operator(x + x) — handles dtype-changing unary operators.
    out_dtype = jax.eval_shape(
        lambda v: op(jnp.add(v, v)), jax.ShapeDtypeStruct(x.shape, in_dtype)
    ).dtype

    # Small-input fast path: XLA already fuses tiny elementwise chains at
    # roofline; skip custom-call launch + reshapes.
    if not force_pallas and n * itemsize <= _FAST_PATH_BYTES:
        return _jnp_fallback(x)

    target_bytes, vmem_limit = _target_block_bytes()
    last = orig_shape[-1]

    if last % 128 == 0:
        # Layout-preserving path: only leading dims are collapsed; the trailing
        # (lane) dim is untouched, so the reshapes are bitcasts under the TPU
        # (8,128) tiled layout — no HBM->HBM copies around the custom call.
        rows = n // last
        out2d = _run_pallas_2d(x.reshape(rows, last), op, out_dtype,
                               target_bytes, vmem_limit, alias_input)
        return out2d.reshape(orig_shape)

    # Fallback: trailing dim narrow / misaligned -> one flatten copy is
    # unavoidable.  Prefer the widest lane that divides n exactly (no padding).
    flat = x.reshape(-1)
    lane = next((c for c in _LANE_CANDIDATES if n % c == 0), None)
    if lane is not None:
        rows = n // lane
        out_flat = _run_pallas_2d(flat.reshape(rows, lane), op, out_dtype,
                                  target_bytes, vmem_limit, alias_input).reshape(-1)
        return out_flat.reshape(orig_shape)

    # Ragged element count: run the kernel on the aligned prefix only and
    # compute the tiny (< _RAGGED_LANE elements) tail in plain jnp — no
    # whole-array pad or whole-array output slice.
    n_main = (n // _RAGGED_LANE) * _RAGGED_LANE
    if n_main == 0:
        return _jnp_fallback(x)
    rows = n_main // _RAGGED_LANE
    main = _run_pallas_2d(flat[:n_main].reshape(rows, _RAGGED_LANE), op, out_dtype,
                          target_bytes, vmem_limit, alias_input).reshape(-1)
    tail = _jnp_fallback(flat[n_main:])
    return jnp.concatenate([main, tail]).reshape(orig_shape)


if __name__ == "__main__":
    key = jax.random.PRNGKey(0)
    k1, k2, k3 = jax.random.split(key, 3)

    # 1) Spec's small NCHW input (2,4,16,16).  Trailing dim 16 -> lane-hunt
    #    fallback path; forced through the Pallas kernel to exercise it, and
    #    also run via the auto path (which takes the tiny-input XLA fast path).
    x1 = jax.random.normal(k1, (2, 4, 16, 16), dtype=jnp.float32)
    ref1 = jax.nn.relu(x1 + x1)
    out1 = jax.block_until_ready(
        model_from_another_op(x1, operator=jax.nn.relu, force_pallas=True))
    assert out1.shape == ref1.shape and out1.dtype == ref1.dtype
    assert jnp.allclose(out1, ref1, atol=1e-6), "mismatch (forced pallas path)"
    out1b = jax.block_until_ready(model_from_another_op(x1, operator=jax.nn.relu))
    assert jnp.allclose(out1b, ref1, atol=1e-6), "mismatch (auto fast path)"

    # 2) Trailing dim multiple of 128 -> layout-preserving path with a
    #    multi-block grid on every TPU generation.
    x2 = jax.random.normal(k2, (16, 512, 512), dtype=jnp.float32)
    ref2 = jax.nn.relu(x2 + x2)
    out2 = jax.block_until_ready(model_from_another_op(x2, operator=jax.nn.relu))
    assert jnp.allclose(out2, ref2, atol=1e-6), "mismatch (aligned path)"

    # 3) Ragged element count -> aligned prefix through the kernel, tail in jnp.
    x3 = jax.random.normal(k3, (5, 7, 41), dtype=jnp.float32)
    ref3 = jax.nn.relu(x3 + x3)
    out3 = jax.block_until_ready(
        model_from_another_op(x3, operator=jax.nn.relu, force_pallas=True))
    assert jnp.allclose(out3, ref3, atol=1e-6), "mismatch (ragged path)"

    print("KERNEL_OK")
</pallas_src>

<mosaic_0001>
module attributes {stable_mosaic.version = 11 : i64} {
  func.func @_add_then_unary_kernel(%arg0: i32, %arg1: i32, %arg2: memref<1x2048xf32, #tpu.memory_space<vmem>>, %arg3: memref<1x2048xf32, #tpu.memory_space<vmem>>) attributes {dimension_semantics = [#tpu.dimension_semantics<parallel>, #tpu.dimension_semantics<parallel>], iteration_bounds = array<i64: 1, 1>, scalar_prefetch = 0 : i64, scratch_operands = 0 : i64, tpu.core_type = #tpu.core_type<tc>, window_params = [{transform_indices = @transform_0, window_bounds = array<i64: 1, 2048>}, {transform_indices = @transform_1, window_bounds = array<i64: 1, 2048>}]} {
    %c0 = arith.constant 0 : index
    %c0_0 = arith.constant 0 : index
    %0 = vector.load %arg2[%c0, %c0_0] : memref<1x2048xf32, #tpu.memory_space<vmem>>, vector<1x2048xf32>
    %1 = arith.addf %0, %0 : vector<1x2048xf32>
    %cst = arith.constant 0.000000e+00 : f32
    %2 = vector.broadcast %cst : f32 to vector<1x2048xf32>
    %3 = arith.maximumf %1, %2 : vector<1x2048xf32>
    %c0_1 = arith.constant 0 : index
    %c0_2 = arith.constant 0 : index
    %4 = vector.load %arg3[%c0_1, %c0_2] : memref<1x2048xf32, #tpu.memory_space<vmem>>, vector<1x2048xf32>
    tpu.vector_store %arg3[%c0_1, %c0_2], %3 {strides = array<i32>} : memref<1x2048xf32, #tpu.memory_space<vmem>>, vector<1x2048xf32>,
    return
  }
  func.func @transform_0(%arg0: i32, %arg1: i32) -> (i32, i32) {
    %c0_i32 = arith.constant 0 : i32
    return %arg0, %arg1 : i32, i32
  }
  func.func @transform_1(%arg0: i32, %arg1: i32) -> (i32, i32) {
    %c0_i32 = arith.constant 0 : i32
    return %arg0, %arg1 : i32, i32
  }
}

</mosaic_0001>

<llo_original>
// kernel: tpu_custom_call.1
$region0: #{tpu_custom_call.1}
  #allocation0 [shape = 'u32[]', space=smem, size = 0x4, offset = 0x4, fixed_abs, tag = 'smem constant byte address 0x4 - core index']
  #allocation1 [shape = 'u32[144,128]{1,0:T(1,128)}', space=vmem, size = 0x12000, scoped, tag = 'internal scratch']
  %s0 = inlined_call_operand.hbm [shape: f32[1,2048], index: 0, kind: input, shape index: {}]
  %s1 = inlined_call_operand.hbm [shape: f32[1,2048], index: 1, kind: output, shape index: {}]
  %s2 = sld [smem:[#allocation0]]
  $region18: #{tpu_custom_call.1} parent=0
    _
  %s4 = ssub.s32 1, %s2
  %s5 = scalar_select 0, %s4, %s2
  $region1: #{tpu_custom_call.1} parent=0
    #allocation2 [shape = 'u8[8192]{0}', space=vmem, size = 0x2000, scoped, tag = 'input window, operand 0, single buffered']
    #allocation3 [shape = 's32[1]{0}', space=sflag, size = 0x4, scoped, tag = 'scoped memory for tpu_custom_call.1']
    #allocation4 [shape = 's32[1]{0}', space=sflag, size = 0x4, scoped, tag = 'scoped memory for tpu_custom_call.1']
    #allocation5 [shape = 'u8[8192]{0}', space=vmem, size = 0x2000, scoped, tag = 'output window, operand 0, single buffered']
    %6 = vsyncpa [#allocation3], 0
    %7 = vsyncpa [#allocation4], 0
    // Predicated region
    $region2: #{tpu_custom_call.1} parent=1 // pred_check
      _
    $region3: #{tpu_custom_call.1} parent=1 // pred_check_branch
      %9 = sbr.rel (0) target = $region5
    $region4: #{tpu_custom_call.1} parent=1 // pred_region
      %s11 = ssub.s32 256, 256
      %12 = vsyncadd [#allocation3], %s11
      %s14 = sshll.u32 [#allocation2], 4
      %s15 = int_to_ptr.vmem [resolvable:$true] %s14
      %17 = dma.hbm_to_vmem [thread:$0]  %s0, 256, %s15, [#allocation3]
    $region5: #{tpu_custom_call.1} parent=1 // pred_fallthru
      _
    // Predicated region
    $region6: #{tpu_custom_call.1} parent=1 // pred_check
      _
    $region7: #{tpu_custom_call.1} parent=1 // pred_check_branch
      %19 = sbr.rel (0) target = $region9
    $region8: #{tpu_custom_call.1} parent=1 // pred_region
      %20 = dma.done [#allocation3], 256
    $region9: #{tpu_custom_call.1} parent=1 // pred_fallthru
      _
    %v21 = vld [vmem:[#allocation2] sm:$0xff]
    %v22 = vld [vmem:[#allocation2 + $0x8] sm:$0xff]
    %v23 = vadd.f32 %v21, %v21
    %v24 = vadd.f32 %v22, %v22
    %v25 = vmax.f32 %v23, 0.0
    %v26 = vmax.f32 %v24, 0.0
    %27 = vst [vmem:[#allocation5] sm:$0xff] %v25
    %28 = vst [vmem:[#allocation5 + $0x8] sm:$0xff] %v26
    // Predicated region
    $region10: #{tpu_custom_call.1} parent=1 // pred_check
      _
    $region11: #{tpu_custom_call.1} parent=1 // pred_check_branch
      %30 = sbr.rel (0) target = $region13
    $region12: #{tpu_custom_call.1} parent=1 // pred_region
      %s32 = ssub.s32 256, 256
      %33 = vsyncadd [#allocation4], %s32
      %s35 = sshll.u32 [#allocation5], 4
      %s36 = int_to_ptr.vmem [resolvable:$true] %s35
      %38 = dma.vmem_to_hbm [thread:$0]  %s36, 256, %s1, [#allocation4]
    $region13: #{tpu_custom_call.1} parent=1 // pred_fallthru
      _
    // Predicated region
    $region14: #{tpu_custom_call.1} parent=1 // pred_check
      _
    $region15: #{tpu_custom_call.1} parent=1 // pred_check_branch
      %40 = sbr.rel (0) target = $region17
    $region16: #{tpu_custom_call.1} parent=1 // pred_region
      %41 = dma.done [#allocation4], 256
    $region17: #{tpu_custom_call.1} parent=1 // pred_fallthru
      _
    %42 = vsyncpa [#allocation3], 1
    %43 = vsyncpa [#allocation4], 1

</llo_original>
